<compile_context>
chip_gen: v5e
topology: v5e:2x2
jax: 0.10.0
libtpu: 0.0.40
codegen_flags: <defaults>
</compile_context>

<pallas_src>
import functools

import jax
import jax.numpy as jnp
from jax.experimental import pallas as pl
from jax.experimental.pallas import tpu as pltpu


def _round_up(x, m):
    return (x + m - 1) // m * m


def _vq_kernel(z_ref, ent_ref, ehi_ref, elo_ref,
               zq_ref, enc_ref, idx_ref, esum_ref, sse_ref,
               *, m_valid, m_total, tile_m):
    """One TILE_M-row tile of the vector-quantizer forward pass."""
    z = z_ref[...]                                            # (tile_m, D_pad) f32

    # --- F.normalize(z, dim=1, eps=1e-12):  z * rsqrt(max(||z||^2, eps^2))  (EUP slot)
    ssq = jnp.sum(z * z, axis=1, keepdims=True)
    zn = (z * jax.lax.rsqrt(jnp.maximum(ssq, 1e-24))).astype(jnp.bfloat16)

    # --- cosine similarity on the MXU: bf16 operands, f32 accumulation.  The codebook
    # is pre-normalized AND pre-transposed to (D_pad, NE_pad) in the wrapper, so this is
    # a native (M,K)x(K,N) feed with no per-tile transpose.
    d = jax.lax.dot_general(
        zn, ent_ref[...],
        (((1,), (0,)), ((), ())),
        preferred_element_type=jnp.float32)                   # (tile_m, NE_pad) f32

    # --- argmax over the codebook axis (torch: d.sort(dim=1)[:, -1]).
    # Padded codebook columns are exact bitwise copies of column 0, so the
    # smallest-index tie-break below can never select a padded code -> no mask pass.
    col = jax.lax.broadcasted_iota(jnp.int32, d.shape, 1)
    d_max = jnp.max(d, axis=1, keepdims=True)
    idx = jnp.min(jnp.where(d == d_max, col, d.shape[1]),
                  axis=1, keepdims=True)                      # (tile_m, 1) int32

    # --- one-hot encodings in bf16 (0/1 exact): feeds the MXU directly and halves the
    # HBM write / VMEM output block vs f32.  Rows that are only M-padding are zeroed.
    enc = (col == idx).astype(jnp.bfloat16)                   # (tile_m, NE_pad) bf16
    if m_valid < m_total:
        row = (jax.lax.broadcasted_iota(jnp.int32, (tile_m, 1), 0)
               + pl.program_id(0) * tile_m)
        enc = enc * (row < m_valid).astype(jnp.bfloat16)

    # --- quantized output: two bf16 MXU passes against the hi/lo split of the f32
    # codebook.  One-hot selection => exact hi[idx] + lo[idx] (~f32-accurate values),
    # replacing the f32xf32 matmul that has no native MXU path on v5e/v6e/v7x.
    zq = (jnp.dot(enc, ehi_ref[...], preferred_element_type=jnp.float32)
          + jnp.dot(enc, elo_ref[...], preferred_element_type=jnp.float32))

    zq_ref[...] = zq
    enc_ref[...] = enc
    # TODO(synk): a lane-dense (1, tile_m) index layout would avoid masked vst of the
    # (tile_m, 1) column; absolute bytes are tiny so we keep the simple layout.
    idx_ref[...] = idx

    # --- per-tile partials (reduced in the wrapper so the M axis stays parallel) ---
    esum_ref[...] = jnp.sum(enc.astype(jnp.float32), axis=0, keepdims=True)[None, :, :]
    diff = zq - z
    sse_ref[...] = jnp.sum(diff * diff, axis=(0, 1), keepdims=True)[None, :, :]


def vq_forward_pallas(z, embedding_weight, *, n, n_e, e_dim, beta, gamma):
    """Mirrors VectorQuantizer.forward(z, mode='cvqvae', training=False)."""
    B = z.shape[0]
    M = B * n
    D_pad = _round_up(e_dim, 128)
    NE_pad = _round_up(n_e, 128)

    # ---- generation-aware VMEM budget (counts codebook blocks + double buffers) ----
    try:
        vmem_cap = pltpu.get_tpu_info().vmem_capacity_bytes
    except Exception:
        vmem_cap = 64 * 1024 * 1024          # conservative (v7x) if the query fails
    vmem_budget = int(vmem_cap) * 3 // 4     # headroom for Mosaic internal scratch

    codebook_bytes = 3 * NE_pad * D_pad * 2 * 2   # 3 bf16 codebook blocks, x2 buffers

    def _vmem_needed(tm):
        per_tile = tm * (2 * 4 * D_pad       # z in  (f32, double-buffered)
                         + 2 * 4 * D_pad     # z_q out (f32, double-buffered)
                         + 2 * 2 * NE_pad    # one-hot out (bf16, double-buffered)
                         + 2 * 4 * 128)      # idx out (int32, lane-padded)
        partials = 2 * 4 * 8 * (NE_pad + 128)
        return per_tile + codebook_bytes + partials

    tile_m = 2048
    while tile_m > 16 and _vmem_needed(tile_m) > vmem_budget:
        tile_m //= 2
    if _round_up(M, 8) <= tile_m:
        tile_m = _round_up(M, 8)             # single tile -> full-extent blocks
    # TODO(synk): for codebooks too large for VMEM (very large n_e * e_dim) add a second
    # "arbitrary" grid axis over NE_pad blocks with running max/argmax scratch.
    M_pad = _round_up(M, tile_m)
    n_tiles = M_pad // tile_m
    # Note (v7x): with n_tiles == 1 only one TensorCore gets work; fine for tiny M.

    # ---- wrapper-side layout plumbing: flatten, pad, pre-normalize / pre-split ----
    z_flat = z.reshape(M, e_dim).astype(jnp.float32)
    z_flat = jnp.pad(z_flat, ((0, M_pad - M), (0, D_pad - e_dim)))

    emb = embedding_weight.astype(jnp.float32)
    nrm = jnp.maximum(jnp.sqrt(jnp.sum(emb * emb, axis=1, keepdims=True)), 1e-12)
    emb_n = emb / nrm
    if NE_pad > n_e:
        # Padded codebook rows = copies of row 0, so padded similarity columns tie with
        # column 0 and always lose the min-index tie-break (no in-kernel mask needed).
        emb_n = jnp.concatenate(
            [emb_n, jnp.broadcast_to(emb_n[0:1], (NE_pad - n_e, e_dim))], axis=0)
    emb_n_t = jnp.pad(emb_n, ((0, 0), (0, D_pad - e_dim))).T.astype(jnp.bfloat16)  # (D_pad, NE_pad)

    emb_pad = jnp.pad(emb, ((0, NE_pad - n_e), (0, D_pad - e_dim)))                 # (NE_pad, D_pad) f32
    emb_hi = emb_pad.astype(jnp.bfloat16)
    emb_lo = (emb_pad - emb_hi.astype(jnp.float32)).astype(jnp.bfloat16)

    out_shapes = (
        jax.ShapeDtypeStruct((M_pad, D_pad), jnp.float32),        # z_q (flattened, padded)
        jax.ShapeDtypeStruct((M_pad, NE_pad), jnp.bfloat16),      # min_encodings (bf16)
        jax.ShapeDtypeStruct((M_pad, 1), jnp.int32),              # min_encoding_indices
        jax.ShapeDtypeStruct((n_tiles, 1, NE_pad), jnp.float32),  # per-tile sum(one-hot)
        jax.ShapeDtypeStruct((n_tiles, 1, 1), jnp.float32),       # per-tile sum((zq - z)^2)
    )

    in_specs = [
        pl.BlockSpec((tile_m, D_pad), lambda i: (i, 0)),          # z tile
        pl.BlockSpec((D_pad, NE_pad), lambda i: (0, 0)),          # normalized codebook^T (bf16)
        pl.BlockSpec((NE_pad, D_pad), lambda i: (0, 0)),          # codebook hi (bf16)
        pl.BlockSpec((NE_pad, D_pad), lambda i: (0, 0)),          # codebook lo (bf16)
    ]
    out_specs = (
        pl.BlockSpec((tile_m, D_pad), lambda i: (i, 0)),
        pl.BlockSpec((tile_m, NE_pad), lambda i: (i, 0)),
        pl.BlockSpec((tile_m, 1), lambda i: (i, 0)),
        pl.BlockSpec((1, 1, NE_pad), lambda i: (i, 0, 0)),
        pl.BlockSpec((1, 1, 1), lambda i: (i, 0, 0)),
    )

    bytes_accessed = (M_pad * D_pad * 4            # z in
                      + 3 * NE_pad * D_pad * 2     # three bf16 codebooks
                      + M_pad * D_pad * 4          # z_q out
                      + M_pad * NE_pad * 2         # one-hots out (bf16)
                      + M_pad * 4)                 # indices out

    zq_p, enc_p, idx_p, esum_p, sse_p = pl.pallas_call(
        functools.partial(_vq_kernel, m_valid=M, m_total=M_pad, tile_m=tile_m),
        out_shape=out_shapes,
        grid_spec=pltpu.PrefetchScalarGridSpec(
            num_scalar_prefetch=0,
            grid=(n_tiles,),
            in_specs=in_specs,
            out_specs=out_specs),
        compiler_params=pltpu.CompilerParams(
            dimension_semantics=("parallel",),
            vmem_limit_bytes=vmem_budget),
        cost_estimate=pl.CostEstimate(
            flops=6 * M_pad * NE_pad * D_pad,       # 3 bf16 matmuls (sim + hi + lo)
            transcendentals=M_pad,
            bytes_accessed=bytes_accessed),
    )(z_flat, emb_n_t, emb_hi, emb_lo)

    # --- cheap wrapper-side reductions over the per-tile partials ---
    e_count = jnp.sum(esum_p, axis=0).reshape(NE_pad)[:n_e]
    e_mean = e_count / float(M)
    perplexity = jnp.exp(-jnp.sum(e_mean * jnp.log(e_mean + 1e-10)))

    loss1 = jnp.sum(sse_p) / float(M * e_dim)      # mean((z_q - z)^2)
    loss2 = loss1                                  # identical value in the forward pass
    loss = gamma * loss1 + beta * loss2

    # z_q = z + (z_q - z).detach()  ->  numerically z_q (straight-through estimator)
    z_q = zq_p[:M, :e_dim].reshape(B, n, e_dim)
    z_output = z_q.reshape(B, n * e_dim)
    min_encodings = enc_p[:M, :n_e].astype(jnp.float32)
    min_encoding_indices = idx_p[:M, 0]

    return (loss, loss1, loss2, z_q, z_output, perplexity,
            min_encodings, min_encoding_indices)


class VectorQuantizerPallas:
    def __init__(self, n, n_e, e_dim, beta, gamma, key):
        self.n, self.n_e, self.e_dim = n, n_e, e_dim
        self.beta, self.gamma = beta, gamma
        # embedding.weight.data.uniform_(-1/n_e, 1/n_e), deterministic init
        self.embedding_weight = jax.random.uniform(
            key, (n_e, e_dim), dtype=jnp.float32,
            minval=-1.0 / n_e, maxval=1.0 / n_e)

    def __call__(self, z):
        return vq_forward_pallas(z, self.embedding_weight,
                                 n=self.n, n_e=self.n_e, e_dim=self.e_dim,
                                 beta=self.beta, gamma=self.gamma)


if __name__ == "__main__":
    key = jax.random.PRNGKey(0)
    k_emb, k_z = jax.random.split(key)

    B, n, e_dim, n_e = 2, 8, 32, 128
    beta, gamma = 0.25, 1.0

    vq = VectorQuantizerPallas(n=n, n_e=n_e, e_dim=e_dim,
                               beta=beta, gamma=gamma, key=k_emb)
    z = jax.random.normal(k_z, (B, n * e_dim), dtype=jnp.float32)

    outs = vq(z)
    outs = jax.block_until_ready(outs)

    (loss, loss1, loss2, z_q, z_output, perplexity,
     min_encodings, min_encoding_indices) = outs
    assert z_q.shape == (B, n, e_dim)
    assert z_output.shape == (B, n * e_dim)
    assert min_encodings.shape == (B * n, n_e)
    assert min_encoding_indices.shape == (B * n,)
    # each row of the one-hot matrix must select exactly one code
    assert bool(jnp.all(jnp.sum(min_encodings, axis=1) == 1.0))
    # indices must agree with the one-hot matrix and stay inside the real codebook
    assert bool(jnp.all(min_encoding_indices == jnp.argmax(min_encodings, axis=1)))
    assert bool(jnp.all(min_encoding_indices < n_e))
    assert bool(jnp.isfinite(loss)) and bool(jnp.isfinite(perplexity))

    print("KERNEL_OK")
</pallas_src>

<mosaic_0001>
module attributes {stable_mosaic.version = 11 : i64} {
  func.func @_vq_kernel(%arg0: i32, %arg1: memref<16x128xf32, #tpu.memory_space<vmem>>, %arg2: memref<128x128xbf16, #tpu.memory_space<vmem>>, %arg3: memref<128x128xbf16, #tpu.memory_space<vmem>>, %arg4: memref<128x128xbf16, #tpu.memory_space<vmem>>, %arg5: memref<16x128xf32, #tpu.memory_space<vmem>>, %arg6: memref<16x128xbf16, #tpu.memory_space<vmem>>, %arg7: memref<16x1xi32, #tpu.memory_space<vmem>>, %arg8: memref<1x1x128xf32, #tpu.memory_space<vmem>>, %arg9: memref<1x1x1xf32, #tpu.memory_space<vmem>>) attributes {dimension_semantics = [#tpu.dimension_semantics<parallel>], iteration_bounds = array<i64: 1>, scalar_prefetch = 0 : i64, scratch_operands = 0 : i64, tpu.core_type = #tpu.core_type<tc>, window_params = [{transform_indices = @transform_0, window_bounds = array<i64: 16, 128>}, {pipeline_mode = #tpu.pipeline_mode<synchronous>, transform_indices = @transform_1, window_bounds = array<i64: 128, 128>}, {pipeline_mode = #tpu.pipeline_mode<synchronous>, transform_indices = @transform_2, window_bounds = array<i64: 128, 128>}, {pipeline_mode = #tpu.pipeline_mode<synchronous>, transform_indices = @transform_3, window_bounds = array<i64: 128, 128>}, {transform_indices = @transform_4, window_bounds = array<i64: 16, 128>}, {transform_indices = @transform_5, window_bounds = array<i64: 16, 128>}, {transform_indices = @transform_6, window_bounds = array<i64: 16, 1>}, {transform_indices = @transform_7, window_bounds = array<i64: 1, 1, 128>}, {transform_indices = @transform_8, window_bounds = array<i64: 1, 1, 1>}]} {
    %c0 = arith.constant 0 : index
    %c0_0 = arith.constant 0 : index
    %0 = vector.load %arg1[%c0, %c0_0] : memref<16x128xf32, #tpu.memory_space<vmem>>, vector<16x128xf32>
    %1 = arith.mulf %0, %0 : vector<16x128xf32>
    %cst = arith.constant dense<0.000000e+00> : vector<16xf32>
    %2 = vector.multi_reduction <add>, %1, %cst [1] : vector<16x128xf32> to vector<16xf32>
    %3 = vector.shape_cast %2 : vector<16xf32> to vector<16x1xf32>
    %cst_1 = arith.constant 1.000000e-24 : f32
    %4 = vector.broadcast %cst_1 : f32 to vector<16x1xf32>
    %5 = arith.maximumf %3, %4 : vector<16x1xf32>
    %6 = math.rsqrt %5 : vector<16x1xf32>
    %7 = vector.broadcast %6 : vector<16x1xf32> to vector<16x128xf32>
    %8 = arith.mulf %0, %7 : vector<16x128xf32>
    %9 = arith.truncf %8 : vector<16x128xf32> to vector<16x128xbf16>
    %c0_2 = arith.constant 0 : index
    %c0_3 = arith.constant 0 : index
    %10 = vector.load %arg2[%c0_2, %c0_3] : memref<128x128xbf16, #tpu.memory_space<vmem>>, vector<128x128xbf16>
    %cst_4 = arith.constant dense<0.000000e+00> : vector<16x128xf32>
    %11 = tpu.matmul %9, %10, %cst_4 {dimension_numbers = #tpu.dot_dimension_numbers<[1], [0], [0], [1], [0, 0, 1, 1], [], []>} : vector<16x128xbf16>, vector<128x128xbf16>, vector<16x128xf32> -> vector<16x128xf32>
    %12 = tpu.iota {dimensions = array<i32: 1>} : vector<16x128xi32>
    %cst_5 = arith.constant dense<0xFF800000> : vector<16xf32>
    %13 = vector.multi_reduction <maximumf>, %11, %cst_5 [1] : vector<16x128xf32> to vector<16xf32>
    %14 = vector.shape_cast %13 : vector<16xf32> to vector<16x1xf32>
    %15 = vector.broadcast %14 : vector<16x1xf32> to vector<16x128xf32>
    %16 = arith.cmpf oeq, %11, %15 : vector<16x128xf32>
    %c128_i32 = arith.constant 128 : i32
    %17 = vector.broadcast %c128_i32 : i32 to vector<16x128xi32>
    %18 = arith.select %16, %12, %17 : vector<16x128xi1>, vector<16x128xi32>
    %cst_6 = arith.constant dense<2147483647> : vector<16xi32>
    %19 = vector.multi_reduction <minsi>, %18, %cst_6 [1] : vector<16x128xi32> to vector<16xi32>
    %20 = vector.shape_cast %19 : vector<16xi32> to vector<16x1xi32>
    %21 = vector.broadcast %20 : vector<16x1xi32> to vector<16x128xi32>
    %22 = arith.cmpi eq, %12, %21 : vector<16x128xi32>
    %23 = arith.extui %22 : vector<16x128xi1> to vector<16x128xi32>
    %24 = arith.sitofp %23 : vector<16x128xi32> to vector<16x128xf32>
    %25 = arith.truncf %24 : vector<16x128xf32> to vector<16x128xbf16>
    %c0_7 = arith.constant 0 : index
    %c0_8 = arith.constant 0 : index
    %26 = vector.load %arg3[%c0_7, %c0_8] : memref<128x128xbf16, #tpu.memory_space<vmem>>, vector<128x128xbf16>
    %cst_9 = arith.constant dense<0.000000e+00> : vector<16x128xf32>
    %27 = tpu.matmul %25, %26, %cst_9 {dimension_numbers = #tpu.dot_dimension_numbers<[1], [0], [0], [1], [0, 0, 1, 1], [], []>} : vector<16x128xbf16>, vector<128x128xbf16>, vector<16x128xf32> -> vector<16x128xf32>
    %c0_10 = arith.constant 0 : index
    %c0_11 = arith.constant 0 : index
    %28 = vector.load %arg4[%c0_10, %c0_11] : memref<128x128xbf16, #tpu.memory_space<vmem>>, vector<128x128xbf16>
    %cst_12 = arith.constant dense<0.000000e+00> : vector<16x128xf32>
    %29 = tpu.matmul %25, %28, %cst_12 {dimension_numbers = #tpu.dot_dimension_numbers<[1], [0], [0], [1], [0, 0, 1, 1], [], []>} : vector<16x128xbf16>, vector<128x128xbf16>, vector<16x128xf32> -> vector<16x128xf32>
    %30 = arith.addf %27, %29 : vector<16x128xf32>
    %c0_13 = arith.constant 0 : index
    %c0_14 = arith.constant 0 : index
    %31 = vector.load %arg5[%c0_13, %c0_14] : memref<16x128xf32, #tpu.memory_space<vmem>>, vector<16x128xf32>
    tpu.vector_store %arg5[%c0_13, %c0_14], %30 {strides = array<i32>} : memref<16x128xf32, #tpu.memory_space<vmem>>, vector<16x128xf32>,
    %c0_15 = arith.constant 0 : index
    %c0_16 = arith.constant 0 : index
    %32 = vector.load %arg6[%c0_15, %c0_16] : memref<16x128xbf16, #tpu.memory_space<vmem>>, vector<16x128xbf16>
    tpu.vector_store %arg6[%c0_15, %c0_16], %25 {strides = array<i32>} : memref<16x128xbf16, #tpu.memory_space<vmem>>, vector<16x128xbf16>,
    %c0_17 = arith.constant 0 : index
    %c0_18 = arith.constant 0 : index
    %33 = vector.load %arg7[%c0_17, %c0_18] : memref<16x1xi32, #tpu.memory_space<vmem>>, vector<16x1xi32>
    tpu.vector_store %arg7[%c0_17, %c0_18], %20 {strides = array<i32>} : memref<16x1xi32, #tpu.memory_space<vmem>>, vector<16x1xi32>,
    %34 = arith.extf %25 : vector<16x128xbf16> to vector<16x128xf32>
    %cst_19 = arith.constant dense<0.000000e+00> : vector<128xf32>
    %35 = vector.multi_reduction <add>, %34, %cst_19 [0] : vector<16x128xf32> to vector<128xf32>
    %36 = vector.shape_cast %35 : vector<128xf32> to vector<1x128xf32>
    %37 = vector.shape_cast %36 : vector<1x128xf32> to vector<1x1x128xf32>
    %c0_20 = arith.constant 0 : index
    %c0_21 = arith.constant 0 : index
    %c0_22 = arith.constant 0 : index
    %38 = vector.load %arg8[%c0_20, %c0_21, %c0_22] : memref<1x1x128xf32, #tpu.memory_space<vmem>>, vector<1x1x128xf32>
    tpu.vector_store %arg8[%c0_20, %c0_21, %c0_22], %37 {strides = array<i32>} : memref<1x1x128xf32, #tpu.memory_space<vmem>>, vector<1x1x128xf32>,
    %39 = arith.subf %30, %0 : vector<16x128xf32>
    %40 = arith.mulf %39, %39 : vector<16x128xf32>
    %41 = vector.shape_cast %40 : vector<16x128xf32> to vector<1x16x128xf32>
    %cst_23 = arith.constant dense<0.000000e+00> : vector<1xf32>
    %42 = vector.multi_reduction <add>, %41, %cst_23 [1, 2] : vector<1x16x128xf32> to vector<1xf32>
    %43 = vector.shape_cast %42 : vector<1xf32> to vector<1x1x1xf32>
    %44 = vector.extract %43[0, 0, 0] : f32 from vector<1x1x1xf32>
    %45 = vector.broadcast %44 : f32 to vector<1x1xf32>
    %46 = vector.shape_cast %45 : vector<1x1xf32> to vector<1x1x1xf32>
    %c0_24 = arith.constant 0 : index
    %c0_25 = arith.constant 0 : index
    %c0_26 = arith.constant 0 : index
    %47 = vector.load %arg9[%c0_24, %c0_25, %c0_26] : memref<1x1x1xf32, #tpu.memory_space<vmem>>, vector<1x1x1xf32>
    tpu.vector_store %arg9[%c0_24, %c0_25, %c0_26], %46 {strides = array<i32>} : memref<1x1x1xf32, #tpu.memory_space<vmem>>, vector<1x1x1xf32>,
    return
  }
  func.func @transform_0(%arg0: i32) -> (i32, i32) {
    %c0_i32 = arith.constant 0 : i32
    %c0_i32_0 = arith.constant 0 : i32
    return %arg0, %c0_i32 : i32, i32
  }
  func.func @transform_1(%arg0: i32) -> (i32, i32) {
    %c0_i32 = arith.constant 0 : i32
    %c0_i32_0 = arith.constant 0 : i32
    %c0_i32_1 = arith.constant 0 : i32
    return %c0_i32, %c0_i32_0 : i32, i32
  }
  func.func @transform_2(%arg0: i32) -> (i32, i32) {
    %c0_i32 = arith.constant 0 : i32
    %c0_i32_0 = arith.constant 0 : i32
    %c0_i32_1 = arith.constant 0 : i32
    return %c0_i32, %c0_i32_0 : i32, i32
  }
  func.func @transform_3(%arg0: i32) -> (i32, i32) {
    %c0_i32 = arith.constant 0 : i32
    %c0_i32_0 = arith.constant 0 : i32
    %c0_i32_1 = arith.constant 0 : i32
    return %c0_i32, %c0_i32_0 : i32, i32
  }
  func.func @transform_4(%arg0: i32) -> (i32, i32) {
    %c0_i32 = arith.constant 0 : i32
    %c0_i32_0 = arith.constant 0 : i32
    return %arg0, %c0_i32 : i32, i32
  }
  func.func @transform_5(%arg0: i32) -> (i32, i32) {
    %c0_i32 = arith.constant 0 : i32
    %c0_i32_0 = arith.constant 0 : i32
    return %arg0, %c0_i32 : i32, i32
  }
  func.func @transform_6(%arg0: i32) -> (i32, i32) {
    %c0_i32 = arith.constant 0 : i32
    %c0_i32_0 = arith.constant 0 : i32
    return %arg0, %c0_i32 : i32, i32
  }
  func.func @transform_7(%arg0: i32) -> (i32, i32, i32) {
    %c0_i32 = arith.constant 0 : i32
    %c0_i32_0 = arith.constant 0 : i32
    %c0_i32_1 = arith.constant 0 : i32
    return %arg0, %c0_i32, %c0_i32_0 : i32, i32, i32
  }
  func.func @transform_8(%arg0: i32) -> (i32, i32, i32) {
    %c0_i32 = arith.constant 0 : i32
    %c0_i32_0 = arith.constant 0 : i32
    %c0_i32_1 = arith.constant 0 : i32
    return %arg0, %c0_i32, %c0_i32_0 : i32, i32, i32
  }
}

</mosaic_0001>

<llo_original>
// kernel: tpu_custom_call.1
$region0: #{tpu_custom_call.1}
  #allocation0 [shape = 'u32[]', space=smem, size = 0x4, offset = 0x4, fixed_abs, tag = 'smem constant byte address 0x4 - core index']
  #allocation1 [shape = 'u32[72,128]{1,0:T(1,128)}', space=vmem, size = 0x9000, scoped, tag = 'internal scratch']
  %s0 = inlined_call_operand.hbm [shape: f32[16,128], index: 0, kind: input, shape index: {}]
  %s1 = inlined_call_operand.hbm [shape: bf16[128,128], index: 1, kind: input, shape index: {}]
  %s2 = inlined_call_operand.hbm [shape: bf16[128,128], index: 2, kind: input, shape index: {}]
  %s3 = inlined_call_operand.hbm [shape: bf16[128,128], index: 3, kind: input, shape index: {}]
  %s4 = inlined_call_operand.hbm [shape: f32[16,128], index: 4, kind: output, shape index: {0}]
  %s5 = inlined_call_operand.hbm [shape: bf16[16,128], index: 5, kind: output, shape index: {1}]
  %s6 = inlined_call_operand.vmem [shape: s32[16,1], index: 6, kind: output, shape index: {2}]
  %s7 = inlined_call_operand.hbm [shape: f32[1,1,128], index: 7, kind: output, shape index: {3}]
  %s8 = inlined_call_operand.hbm [shape: f32[1,1,1], index: 8, kind: output, shape index: {4}]
  %9 = xla_tuple %s4, %s5, %s6, %s7, %s8
  %s10 = sld [smem:[#allocation0]]
  $region74: #{tpu_custom_call.1} parent=0
    _
  %s12 = ssub.s32 1, %s10
  %s13 = scalar_select 0, %s12, %s10
  $region1: #{tpu_custom_call.1} parent=0
    #allocation2 [shape = 'u8[8192]{0}', space=vmem, size = 0x2000, scoped, tag = 'input window, operand 0, single buffered']
    #allocation3 [shape = 's32[1]{0}', space=sflag, size = 0x4, scoped, tag = 'scoped memory for tpu_custom_call.1']
    #allocation4 [shape = 's32[1]{0}', space=sflag, size = 0x4, scoped, tag = 'scoped memory for tpu_custom_call.1']
    #allocation5 [shape = 'u8[32768]{0}', space=vmem, size = 0x8000, scoped, tag = 'input window, operand 1, single buffered']
    #allocation6 [shape = 's32[1]{0}', space=sflag, size = 0x4, scoped, tag = 'scoped memory for tpu_custom_call.1']
    #allocation7 [shape = 'u8[32768]{0}', space=vmem, size = 0x8000, scoped, tag = 'input window, operand 2, single buffered']
    #allocation8 [shape = 'u8[32768]{0}', space=vmem, size = 0x8000, scoped, tag = 'input window, operand 3, single buffered']
    #allocation9 [shape = 's32[1]{0}', space=sflag, size = 0x4, scoped, tag = 'scoped memory for tpu_custom_call.1']
    #allocation10 [shape = 'u8[8192]{0}', space=vmem, size = 0x2000, scoped, tag = 'output window, operand 0, single buffered']
    #allocation11 [shape = 'u8[4096]{0}', space=vmem, size = 0x1000, scoped, tag = 'output window, operand 1, single buffered']
    #allocation12 [shape = 's32[1]{0}', space=sflag, size = 0x4, scoped, tag = 'scoped memory for tpu_custom_call.1']
    #allocation13 [shape = 'u8[512]{0}', space=vmem, size = 0x400, scoped, tag = 'output window, operand 3, single buffered']
    #allocation14 [shape = 'u8[512]{0}', space=vmem, size = 0x400, scoped, tag = 'output window, operand 4, single buffered']
    #allocation15 [shape = 's32[1]{0}', space=sflag, size = 0x4, scoped, tag = 'scoped memory for tpu_custom_call.1']
    %14 = vsyncpa [#allocation3], 0
    %15 = vsyncpa [#allocation6], 0
    %16 = vsyncpa [#allocation9], 0
    %17 = vsyncpa [#allocation4], 0
    %18 = vsyncpa [#allocation12], 0
    %19 = vsyncpa [#allocation15], 0
    // Predicated region
    $region2: #{tpu_custom_call.1} parent=1 // pred_check
      _
    $region3: #{tpu_custom_call.1} parent=1 // pred_check_branch
      %21 = sbr.rel (0) target = $region5
    $region4: #{tpu_custom_call.1} parent=1 // pred_region
      %23 = vsyncadd [#allocation3], 0
      %s24 = sshll.u32 %s0, 4
      %s25 = int_to_ptr.hbm [resolvable:$true] %s24
      %s26 = sshll.u32 [#allocation2], 4
      %s27 = int_to_ptr.vmem [resolvable:$true] %s26
      %32 = dma.hbm_to_vmem [thread:$0]  %s25, 256, %s27, [#allocation3], 128, 128, 8
    $region5: #{tpu_custom_call.1} parent=1 // pred_fallthru
      _
    // Predicated region
    $region6: #{tpu_custom_call.1} parent=1 // pred_check
      _
    $region7: #{tpu_custom_call.1} parent=1 // pred_check_branch
      %34 = sbr.rel (0) target = $region9
    $region8: #{tpu_custom_call.1} parent=1 // pred_region
      %36 = vsyncadd [#allocation6], 0
      %s37 = sshll.u32 %s1, 4
      %s38 = int_to_ptr.hbm [resolvable:$true] %s37
      %s39 = sshll.u32 [#allocation5], 4
      %s40 = int_to_ptr.vmem [resolvable:$true] %s39
      %45 = dma.hbm_to_vmem [thread:$0]  %s38, 1024, %s40, [#allocation6], 64, 64, 4
    $region9: #{tpu_custom_call.1} parent=1 // pred_fallthru
      _
    // Predicated region
    $region10: #{tpu_custom_call.1} parent=1 // pred_check
      _
    $region11: #{tpu_custom_call.1} parent=1 // pred_check_branch
      %47 = sbr.rel (0) target = $region13
    $region12: #{tpu_custom_call.1} parent=1 // pred_region
      %49 = vsyncadd [#allocation6], 0
      %s50 = sshll.u32 %s2, 4
      %s51 = int_to_ptr.hbm [resolvable:$true] %s50
      %s52 = sshll.u32 [#allocation7], 4
      %s53 = int_to_ptr.vmem [resolvable:$true] %s52
      %58 = dma.hbm_to_vmem [thread:$0]  %s51, 1024, %s53, [#allocation6], 64, 64, 4
    $region13: #{tpu_custom_call.1} parent=1 // pred_fallthru
      _
    // Predicated region
    $region14: #{tpu_custom_call.1} parent=1 // pred_check
      _
    $region15: #{tpu_custom_call.1} parent=1 // pred_check_branch
      %60 = sbr.rel (0) target = $region17
    $region16: #{tpu_custom_call.1} parent=1 // pred_region
      %62 = vsyncadd [#allocation9], 0
      %s63 = sshll.u32 %s3, 4
      %s64 = int_to_ptr.hbm [resolvable:$true] %s63
      %s65 = sshll.u32 [#allocation8], 4
      %s66 = int_to_ptr.vmem [resolvable:$true] %s65
      %71 = dma.hbm_to_vmem [thread:$0]  %s64, 1024, %s66, [#allocation9], 64, 64, 4
    $region17: #{tpu_custom_call.1} parent=1 // pred_fallthru
      _
    // Predicated region
    $region18: #{tpu_custom_call.1} parent=1 // pred_check
      _
    $region19: #{tpu_custom_call.1} parent=1 // pred_check_branch
      %73 = sbr.rel (0) target = $region21
    $region20: #{tpu_custom_call.1} parent=1 // pred_region
      %75 = dma.done [#allocation3], 256
    $region21: #{tpu_custom_call.1} parent=1 // pred_fallthru
      _
    // Predicated region
    $region22: #{tpu_custom_call.1} parent=1 // pred_check
      _
    $region23: #{tpu_custom_call.1} parent=1 // pred_check_branch
      %77 = sbr.rel (0) target = $region25
    $region24: #{tpu_custom_call.1} parent=1 // pred_region
      %79 = dma.done [#allocation6], 1024
    $region25: #{tpu_custom_call.1} parent=1 // pred_fallthru
      _
    // Predicated region
    $region26: #{tpu_custom_call.1} parent=1 // pred_check
      _
    $region27: #{tpu_custom_call.1} parent=1 // pred_check_branch
      %81 = sbr.rel (0) target = $region29
    $region28: #{tpu_custom_call.1} parent=1 // pred_region
      %83 = dma.done [#allocation6], 1024
    $region29: #{tpu_custom_call.1} parent=1 // pred_fallthru
      _
    // Predicated region
    $region30: #{tpu_custom_call.1} parent=1 // pred_check
      _
    $region31: #{tpu_custom_call.1} parent=1 // pred_check_branch
      %85 = sbr.rel (0) target = $region33
    $region32: #{tpu_custom_call.1} parent=1 // pred_region
      %87 = dma.done [#allocation9], 1024
    $region33: #{tpu_custom_call.1} parent=1 // pred_fallthru
      _
    %v88 = vld [vmem:[#allocation2] sm:$0xff]
    %v89 = vld [vmem:[#allocation2 + $0x8] sm:$0xff]
    %v90 = vmul.f32 %v88, %v88
    %v91 = vmul.f32 %v89, %v89
    %92 = vadd.xlane.f32.xlu0 %v90
    %v93 = vpop.xlane.xlu0 %92
    %94 = vadd.xlane.f32.xlu0 %v91
    %v95 = vpop.xlane.xlu0 %94
    %v96 = vmax.f32 %v93, 1e-24
    %v97 = vmax.f32 %v95, 1e-24
    %v98 = vrsqrt.pop %v96
    %v99 = vmul.f32 %v98, %v96
    %v100 = vmul.f32 %v99, %v98
    %v101 = vmul.f32 0.5, %v100
    %v102 = vsub.f32 1.5, %v101
    %v103 = vmul.f32 %v98, %v102
    %vm104 = vweird.f32 %v96
    %vm105 = vweird.f32 %v98
    %vm106 = vmor %vm104, %vm105
    %v107 = vsel %vm106, %v98, %v103
    %v108 = vrsqrt.pop %v97
    %v109 = vmul.f32 %v108, %v97
    %v110 = vmul.f32 %v109, %v108
    %v111 = vmul.f32 0.5, %v110
    %v112 = vsub.f32 1.5, %v111
    %v113 = vmul.f32 %v108, %v112
    %vm114 = vweird.f32 %v97
    %vm115 = vweird.f32 %v108
    %vm116 = vmor %vm114, %vm115
    %v117 = vsel %vm116, %v108, %v113
    %v118 = vmul.f32 %v88, %v107
    %v119 = vmul.f32 %v89, %v117
    %v120 = vpack.c.bf16 %v119, %v118
    %v121 = vld [vmem:[#allocation5] sm:$0xf]
    %v122 = vld [vmem:[#allocation5 + $0x4] sm:$0xf]
    %v123 = vld [vmem:[#allocation5 + $0x8] sm:$0xf]
    %v124 = vld [vmem:[#allocation5 + $0xc] sm:$0xf]
    %v125 = vld [vmem:[#allocation5 + $0x10] sm:$0xf]
    %v126 = vld [vmem:[#allocation5 + $0x14] sm:$0xf]
    %v127 = vld [vmem:[#allocation5 + $0x18] sm:$0xf]
    %v128 = vld [vmem:[#allocation5 + $0x1c] sm:$0xf]
    %v129 = vld [vmem:[#allocation5 + $0x20] sm:$0xf]
    %v130 = vld [vmem:[#allocation5 + $0x24] sm:$0xf]
    %v131 = vld [vmem:[#allocation5 + $0x28] sm:$0xf]
    %v132 = vld [vmem:[#allocation5 + $0x2c] sm:$0xf]
    %v133 = vld [vmem:[#allocation5 + $0x30] sm:$0xf]
    %v134 = vld [vmem:[#allocation5 + $0x34] sm:$0xf]
    %v135 = vld [vmem:[#allocation5 + $0x38] sm:$0xf]
    %v136 = vld [vmem:[#allocation5 + $0x3c] sm:$0xf]
    %v153 = vunpack.c.l.b16 %v121
    %v154 = vunpack.c.l.b16 %v122
    %v155 = vunpack.c.l.b16 %v123
    %v156 = vunpack.c.l.b16 %v124
    %v157 = vunpack.c.l.b16 %v125
    %v158 = vunpack.c.l.b16 %v126
    %v159 = vunpack.c.l.b16 %v127
    %v160 = vunpack.c.l.b16 %v128
    %v161 = vunpack.c.l.b16 %v129
    %v162 = vunpack.c.l.b16 %v130
    %v163 = vunpack.c.l.b16 %v131
    %v164 = vunpack.c.l.b16 %v132
    %v165 = vunpack.c.l.b16 %v133
    %v166 = vunpack.c.l.b16 %v134
    %v167 = vunpack.c.l.b16 %v135
    %v168 = vunpack.c.l.b16 %v136
    %v169 = vpack.c.b16 %v154, %v153
    %v170 = vpack.c.b16 %v156, %v155
    %v171 = vpack.c.b16 %v158, %v157
    %v172 = vpack.c.b16 %v160, %v159
    %v173 = vpack.c.b16 %v162, %v161
    %v174 = vpack.c.b16 %v164, %v163
    %v175 = vpack.c.b16 %v166, %v165
    %v176 = vpack.c.b16 %v168, %v167
    %185 = vmatpush.bf16.msra.mxu0 %v176
    %186 = vmatpush.bf16.msra.mxu0 %v175
    %187 = vmatpush.bf16.msra.mxu0 %v174
    %188 = vmatpush.bf16.msra.mxu0 %v173
    %189 = vmatpush.bf16.msra.mxu0 %v172
    %190 = vmatpush.bf16.msra.mxu0 %v171
    %191 = vmatpush.bf16.msra.mxu0 %v170
    %192 = vmatpush.bf16.msra.mxu0 %v169
    %193 = vmatmul.bf16.gmra.mxu0 %v120
    %v194 = vpop.f32.mrf.mxu0
    %v195 = vadd.f32 0.0, %v194
    %v196 = vpop.f32.mrf.mxu0
    %v197 = vadd.f32 0.0, %v196
    %198 = vdwg.mxu0
    %v199 = vlaneseq
    %v200 = vand.u32 %v199, 127
    %201 = vmax.xlane.f32.xlu0 %v195
    %v202 = vpop.xlane.xlu0 %201
    %203 = vmax.xlane.f32.xlu0 %v197
    %v204 = vpop.xlane.xlu0 %203
    %vm205 = vcmp.eq.f32.partialorder %v195, %v202
    %vm206 = vcmp.eq.f32.partialorder %v197, %v204
    %v207 = vsel %vm205, %v200, 128
    %v208 = vsel %vm206, %v200, 128
    %v209 = vand.u32 %v207, 65535
    %v210 = vshra.s32 %v207, 16
    %v211 = vcvt.s32.f32 %v209
    %v212 = vcvt.s32.f32 %v210
    %213 = vmin.xlane.f32.xlu0 %v212
    %v214 = vpop.xlane.xlu0 %213
    %vm215 = vcmp.eq.f32.partialorder %v212, %v214
    %v216 = vsel %vm215, %v211, inf
    %217 = vmin.xlane.f32.xlu0 %v216
    %v218 = vpop.xlane.xlu0 %217
    %v219 = vcvt.f32.s32 %v218
    %v220 = vcvt.f32.s32 %v214
    %v221 = vshll.u32 %v220, 16
    %v222 = vadd.s32 %v221, %v219
    %v223 = vand.u32 %v208, 65535
    %v224 = vshra.s32 %v208, 16
    %v225 = vcvt.s32.f32 %v223
    %v226 = vcvt.s32.f32 %v224
    %227 = vmin.xlane.f32.xlu0 %v226
    %v228 = vpop.xlane.xlu0 %227
    %vm229 = vcmp.eq.f32.partialorder %v226, %v228
    %v230 = vsel %vm229, %v225, inf
    %231 = vmin.xlane.f32.xlu0 %v230
    %v232 = vpop.xlane.xlu0 %231
    %v233 = vcvt.f32.s32 %v232
    %v234 = vcvt.f32.s32 %v228
    %v235 = vshll.u32 %v234, 16
    %v236 = vadd.s32 %v235, %v233
    %vm237 = vcmp.eq.s32.totalorder %v200, %v222
    %vm238 = vcmp.eq.s32.totalorder %v200, %v236
    %v239 = vsel %vm237, 1, 0
    %v240 = vsel %vm238, 1, 0
    %v241 = vcvt.s32.f32 %v239
    %v242 = vcvt.s32.f32 %v240
    %v243 = vpack.c.bf16 %v241, %v241
    %v244 = vpack.c.bf16 %v242, %v242
    %v245 = vld [vmem:[#allocation7] sm:$0xf]
    %v246 = vld [vmem:[#allocation7 + $0x4] sm:$0xf]
    %v247 = vld [vmem:[#allocation7 + $0x8] sm:$0xf]
    %v248 = vld [vmem:[#allocation7 + $0xc] sm:$0xf]
    %v249 = vld [vmem:[#allocation7 + $0x10] sm:$0xf]
    %v250 = vld [vmem:[#allocation7 + $0x14] sm:$0xf]
    %v251 = vld [vmem:[#allocation7 + $0x18] sm:$0xf]
    %v252 = vld [vmem:[#allocation7 + $0x1c] sm:$0xf]
    %v253 = vld [vmem:[#allocation7 + $0x20] sm:$0xf]
    %v254 = vld [vmem:[#allocation7 + $0x24] sm:$0xf]
    %v255 = vld [vmem:[#allocation7 + $0x28] sm:$0xf]
    %v256 = vld [vmem:[#allocation7 + $0x2c] sm:$0xf]
    %v257 = vld [vmem:[#allocation7 + $0x30] sm:$0xf]
    %v258 = vld [vmem:[#allocation7 + $0x34] sm:$0xf]
    %v259 = vld [vmem:[#allocation7 + $0x38] sm:$0xf]
    %v260 = vld [vmem:[#allocation7 + $0x3c] sm:$0xf]
    %v261 = vld [vmem:[#allocation8] sm:$0xf]
    %v262 = vld [vmem:[#allocation8 + $0x4] sm:$0xf]
    %v263 = vld [vmem:[#allocation8 + $0x8] sm:$0xf]
    %v264 = vld [vmem:[#allocation8 + $0xc] sm:$0xf]
    %v265 = vld [vmem:[#allocation8 + $0x10] sm:$0xf]
    %v266 = vld [vmem:[#allocation8 + $0x14] sm:$0xf]
    %v267 = vld [vmem:[#allocation8 + $0x18] sm:$0xf]
    %v268 = vld [vmem:[#allocation8 + $0x1c] sm:$0xf]
    %v269 = vld [vmem:[#allocation8 + $0x20] sm:$0xf]
    %v270 = vld [vmem:[#allocation8 + $0x24] sm:$0xf]
    %v271 = vld [vmem:[#allocation8 + $0x28] sm:$0xf]
    %v272 = vld [vmem:[#allocation8 + $0x2c] sm:$0xf]
    %v273 = vld [vmem:[#allocation8 + $0x30] sm:$0xf]
    %v274 = vld [vmem:[#allocation8 + $0x34] sm:$0xf]
    %v275 = vld [vmem:[#allocation8 + $0x38] sm:$0xf]
    %v276 = vld [vmem:[#allocation8 + $0x3c] sm:$0xf]
    %v279 = vunpack.c.l.b16 %v243
    %v280 = vunpack.c.l.b16 %v244
    %v281 = vpack.c.b16 %v280, %v279
    %v299 = vunpack.c.l.b16 %v261
    %v300 = vunpack.c.l.b16 %v262
    %v301 = vunpack.c.l.b16 %v263
    %v302 = vunpack.c.l.b16 %v264
    %v303 = vunpack.c.l.b16 %v265
    %v304 = vunpack.c.l.b16 %v266
    %v305 = vunpack.c.l.b16 %v267
    %v306 = vunpack.c.l.b16 %v268
    %v307 = vunpack.c.l.b16 %v269
    %v308 = vunpack.c.l.b16 %v270
    %v309 = vunpack.c.l.b16 %v271
    %v310 = vunpack.c.l.b16 %v272
    %v311 = vunpack.c.l.b16 %v273
    %v312 = vunpack.c.l.b16 %v274
    %v313 = vunpack.c.l.b16 %v275
    %v314 = vunpack.c.l.b16 %v276
    %v315 = vpack.c.b16 %v300, %v299
    %v316 = vpack.c.b16 %v302, %v301
    %v317 = vpack.c.b16 %v304, %v303
    %v318 = vpack.c.b16 %v306, %v305
    %v319 = vpack.c.b16 %v308, %v307
    %v320 = vpack.c.b16 %v310, %v309
    %v321 = vpack.c.b16 %v312, %v311
    %v322 = vpack.c.b16 %v314, %v313
    %331 = vmatpush.bf16.msra.mxu0 %v322
    %332 = vmatpush.bf16.msra.mxu0 %v321
    %333 = vmatpush.bf16.msra.mxu0 %v320
    %334 = vmatpush.bf16.msra.mxu0 %v319
    %335 = vmatpush.bf16.msra.mxu0 %v318
    %336 = vmatpush.bf16.msra.mxu0 %v317
    %337 = vmatpush.bf16.msra.mxu0 %v316
    %338 = vmatpush.bf16.msra.mxu0 %v315
    %339 = vmatmul.bf16.gmra.mxu0 %v281
    %v340 = vpop.f32.mrf.mxu0
    %v341 = vadd.f32 0.0, %v340
    %v342 = vpop.f32.mrf.mxu0
    %v343 = vadd.f32 0.0, %v342
    %344 = vdwg.mxu0
    %v361 = vunpack.c.l.b16 %v245
    %v362 = vunpack.c.l.b16 %v246
    %v363 = vunpack.c.l.b16 %v247
    %v364 = vunpack.c.l.b16 %v248
    %v365 = vunpack.c.l.b16 %v249
    %v366 = vunpack.c.l.b16 %v250
    %v367 = vunpack.c.l.b16 %v251
    %v368 = vunpack.c.l.b16 %v252
    %v369 = vunpack.c.l.b16 %v253
    %v370 = vunpack.c.l.b16 %v254
    %v371 = vunpack.c.l.b16 %v255
    %v372 = vunpack.c.l.b16 %v256
    %v373 = vunpack.c.l.b16 %v257
    %v374 = vunpack.c.l.b16 %v258
    %v375 = vunpack.c.l.b16 %v259
    %v376 = vunpack.c.l.b16 %v260
    %v377 = vpack.c.b16 %v362, %v361
    %v378 = vpack.c.b16 %v364, %v363
    %v379 = vpack.c.b16 %v366, %v365
    %v380 = vpack.c.b16 %v368, %v367
    %v381 = vpack.c.b16 %v370, %v369
    %v382 = vpack.c.b16 %v372, %v371
    %v383 = vpack.c.b16 %v374, %v373
    %v384 = vpack.c.b16 %v376, %v375
    %393 = vmatpush.bf16.msra.mxu0 %v384
    %394 = vmatpush.bf16.msra.mxu0 %v383
    %395 = vmatpush.bf16.msra.mxu0 %v382
    %396 = vmatpush.bf16.msra.mxu0 %v381
    %397 = vmatpush.bf16.msra.mxu0 %v380
    %398 = vmatpush.bf16.msra.mxu0 %v379
    %399 = vmatpush.bf16.msra.mxu0 %v378
    %400 = vmatpush.bf16.msra.mxu0 %v377
    %401 = vmatmul.bf16.gmra.mxu0 %v281
    %v402 = vpop.f32.mrf.mxu0
    %v403 = vadd.f32 %v341, %v402
    %v404 = vpop.f32.mrf.mxu0
    %v405 = vadd.f32 %v343, %v404
    %406 = vdwg.mxu0
    %407 = vst [vmem:[#allocation10] sm:$0xff] %v403
    %408 = vst [vmem:[#allocation10 + $0x8] sm:$0xff] %v405
    %409 = vst [vmem:[#allocation11] sm:$0xf] %v243
    %410 = vst [vmem:[#allocation11 + $0x4] sm:$0xf] %v244
    %vm411 = vcmask 7168
    %412 = vst.msk [vmem:[%s6] sm:$0xff] %vm411, %v222
    %413 = vst.msk [vmem:[%s6 + $0x8] sm:$0xff] %vm411, %v236
    %v414 = vunpack.c.l.bf16 %v243
    %v415 = vunpack.c.l.bf16 %v244
    %v416 = vadd.f32 %v414, %v415
    %v417 = vrot.slane %v416, 4
    %v418 = vadd.f32 %v416, %v417
    %v419 = vrot.slane %v418, 2
    %v420 = vadd.f32 %v418, %v419
    %v421 = vrot.slane %v420, 1
    %v422 = vadd.f32 %v420, %v421
    %423 = vst [vmem:[#allocation13] sm:$0x1] %v422
    %v424 = vsub.f32 %v403, %v88
    %v425 = vsub.f32 %v405, %v89
    %v426 = vmul.f32 %v424, %v424
    %v427 = vmul.f32 %v425, %v425
    %v428 = vadd.f32 %v426, %v427
    %429 = vadd.xlane.f32.xlu0 %v428
    %v430 = vpop.xlane.xlu0 %429
    %v431 = vrot.slane %v430, 4
    %v432 = vadd.f32 %v430, %v431
    %v433 = vrot.slane %v432, 2
    %v434 = vadd.f32 %v432, %v433
    %v435 = vrot.slane %v434, 1
    %v436 = vadd.f32 %v434, %v435
    %s437 = vtos %v436
    %v438 = vstv %s437
    %vm439 = vcmask 0
    %440 = vst.msk [vmem:[#allocation14] sm:$0x1] %vm439, %v438
    // Predicated region
    $region34: #{tpu_custom_call.1} parent=1 // pred_check
      _
    $region35: #{tpu_custom_call.1} parent=1 // pred_check_branch
      %442 = sbr.rel (0) target = $region37
    $region36: #{tpu_custom_call.1} parent=1 // pred_region
      %444 = vsyncadd [#allocation4], 0
      %s445 = sshll.u32 [#allocation10], 4
      %s446 = int_to_ptr.vmem [resolvable:$true] %s445
      %s447 = sshll.u32 %s4, 4
      %s448 = int_to_ptr.hbm [resolvable:$true] %s447
      %453 = dma.vmem_to_hbm [thread:$0]  %s446, 256, %s448, [#allocation4], 128, 128, 8
    $region37: #{tpu_custom_call.1} parent=1 // pred_fallthru
      _
    // Predicated region
    $region38: #{tpu_custom_call.1} parent=1 // pred_check
      _
    $region39: #{tpu_custom_call.1} parent=1 // pred_check_branch
      %455 = sbr.rel (0) target = $region41
    $region40: #{tpu_custom_call.1} parent=1 // pred_region
      %457 = vsyncadd [#allocation12], 0
      %s458 = sshll.u32 [#allocation11], 4
      %s459 = int_to_ptr.vmem [resolvable:$true] %s458
      %s460 = sshll.u32 %s5, 4
      %s461 = int_to_ptr.hbm [resolvable:$true] %s460
      %466 = dma.vmem_to_hbm [thread:$0]  %s459, 128, %s461, [#allocation12], 64, 64, 4
    $region41: #{tpu_custom_call.1} parent=1 // pred_fallthru
      _
    // Predicated region
    $region42: #{tpu_custom_call.1} parent=1 // pred_check
      _
    $region43: #{tpu_custom_call.1} parent=1 // pred_check_branch
      %468 = sbr.rel (0) target = $region45
    $region44: #{tpu_custom_call.1} parent=1 // pred_region
      _
    $region45: #{tpu_custom_call.1} parent=1 // pred_fallthru
      _
    // Predicated region
    $region46: #{tpu_custom_call.1} parent=1 // pred_check
      _
    $region47: #{tpu_custom_call.1} parent=1 // pred_check_branch
      %470 = sbr.rel (0) target = $region49
    $region48: #{tpu_custom_call.1} parent=1 // pred_region
      %472 = vsyncadd [#allocation12], 0
      %s474 = sshll.u32 [#allocation13], 4
      %s475 = int_to_ptr.vmem [resolvable:$true] %s474
      %s476 = sshll.u32 %s7, 4
      %s477 = int_to_ptr.hbm [resolvable:$true] %s476
      %479 = dma.vmem_to_hbm [thread:$0]  %s475, 16, %s477, [#allocation12]
    $region49: #{tpu_custom_call.1} parent=1 // pred_fallthru
      _
    // Predicated region
    $region50: #{tpu_custom_call.1} parent=1 // pred_check
      _
    $region51: #{tpu_custom_call.1} parent=1 // pred_check_branch
      %481 = sbr.rel (0) target = $region53
    $region52: #{tpu_custom_call.1} parent=1 // pred_region
      %483 = vsyncadd [#allocation15], 0
      %s485 = sshll.u32 [#allocation14], 4
      %s486 = int_to_ptr.vmem [resolvable:$true] %s485
      %s487 = sshll.u32 %s8, 4
      %s488 = int_to_ptr.hbm [resolvable:$true] %s487
      %490 = dma.vmem_to_hbm [thread:$0]  %s486, 16, %s488, [#allocation15]
    $region53: #{tpu_custom_call.1} parent=1 // pred_fallthru
      _
    // Predicated region
    $region54: #{tpu_custom_call.1} parent=1 // pred_check
      _
    $region55: #{tpu_custom_call.1} parent=1 // pred_check_branch
      %492 = sbr.rel (0) target = $region57
    $region56: #{tpu_custom_call.1} parent=1 // pred_region
      %494 = dma.done [#allocation4], 256
    $region57: #{tpu_custom_call.1} parent=1 // pred_fallthru
      _
    // Predicated region
    $region58: #{tpu_custom_call.1} parent=1 // pred_check
      _
    $region59: #{tpu_custom_call.1} parent=1 // pred_check_branch
      %496 = sbr.rel (0) target = $region61
    $region60: #{tpu_custom_call.1} parent=1 // pred_region
      %498 = dma.done [#allocation12], 128
    $region61: #{tpu_custom_call.1} parent=1 // pred_fallthru
      _
    // Predicated region
    $region62: #{tpu_custom_call.1} parent=1 // pred_check
      _
    $region63: #{tpu_custom_call.1} parent=1 // pred_check_branch
      %500 = sbr.rel (0) target = $region65
    $region64: #{tpu_custom_call.1} parent=1 // pred_region
      _
    $region65: #{tpu_custom_call.1} parent=1 // pred_fallthru
      _
    // Predicated region
    $region66: #{tpu_custom_call.1} parent=1 // pred_check
      _
    $region67: #{tpu_custom_call.1} parent=1 // pred_check_branch
      %502 = sbr.rel (0) target = $region69
    $region68: #{tpu_custom_call.1} parent=1 // pred_region
      %504 = dma.done [#allocation12], 16
    $region69: #{tpu_custom_call.1} parent=1 // pred_fallthru
      _
    // Predicated region
    $region70: #{tpu_custom_call.1} parent=1 // pred_check
      _
    $region71: #{tpu_custom_call.1} parent=1 // pred_check_branch
      %506 = sbr.rel (0) target = $region73
    $region72: #{tpu_custom_call.1} parent=1 // pred_region
      %508 = dma.done [#allocation15], 16
    $region73: #{tpu_custom_call.1} parent=1 // pred_fallthru
      _
    %509 = vsyncpa [#allocation3], 1
    %510 = vsyncpa [#allocation6], 1
    %511 = vsyncpa [#allocation9], 1
    %512 = vsyncpa [#allocation4], 1
    %513 = vsyncpa [#allocation12], 1
    %514 = vsyncpa [#allocation15], 1

</llo_original>
